<compile_context>
chip_gen: v7x
topology: tpu7x:2x2x1
jax: 0.10.0
libtpu: 0.0.40
codegen_flags: <defaults>
</compile_context>

<pallas_src>
import functools

import jax
import jax.numpy as jnp
from jax import lax
from jax.experimental import pallas as pl
from jax.experimental.pallas import tpu as pltpu


def _round_up(x: int, m: int) -> int:
    return ((x + m - 1) // m) * m


def _avg_readout_kernel(mask_ref, emb_ref, out_ref, *scratch,
                        n_total, block_n, rsum_col, ragged_n):
    k = pl.program_id(1)
    nk = pl.num_programs(1)

    @pl.when(k == 0)
    def _init():
        out_ref[...] = jnp.zeros_like(out_ref)
        if rsum_col is None:
            scratch[0][...] = jnp.zeros_like(scratch[0])

    mask_blk = mask_ref[...]
    emb_blk = emb_ref[...]

    if ragged_n:
        # Zero the out-of-bounds tail of the last N tile (its contents are
        # unspecified).  Both operands are zeroed so 0 * garbage never NaNs.
        base = k * block_n
        col = lax.broadcasted_iota(jnp.int32, mask_blk.shape, 1)
        mask_blk = jnp.where(base + col < n_total, mask_blk,
                             jnp.zeros_like(mask_blk))
        row = lax.broadcasted_iota(jnp.int32, emb_blk.shape, 0)
        emb_blk = jnp.where(base + row < n_total, emb_blk,
                            jnp.zeros_like(emb_blk))

    # vsum partial into the resident f32 accumulator (MXU, f32 accumulate).
    out_ref[...] += jnp.dot(mask_blk, emb_blk,
                            preferred_element_type=jnp.float32)

    if rsum_col is None:
        # D lane-aligned -> no spare column; accumulate row_sum separately.
        scratch[0][...] += jnp.sum(mask_blk.astype(jnp.float32), axis=1,
                                   keepdims=True)

    @pl.when(k == nk - 1)
    def _finish():
        vsum = out_ref[...]                               # [tm, D_pad] f32
        if rsum_col is not None:
            # row_sum came for free out of the matmul (emb ones column).
            rsum = vsum[:, rsum_col:rsum_col + 1]
            lane = lax.broadcasted_iota(jnp.int32, vsum.shape, 1)
            vsum = jnp.where(lane == rsum_col, 0.0, vsum)
        else:
            rsum = scratch[0][...]
        inv_rs = pl.reciprocal(rsum, approx=True)         # EUP; cancels in L2 norm
        g = vsum * inv_rs                                  # vsum / row_sum
        # F.normalize(p=2, dim=1): x * rsqrt(max(||x||^2, eps^2))
        sq = jnp.sum(g * g, axis=1, keepdims=True)         # padded cols are 0
        inv_norm = lax.rsqrt(jnp.maximum(sq, 1e-24))       # EUP
        out_ref[...] = (g * inv_norm).astype(out_ref.dtype)


def avg_readout(mask: jax.Array, emb: jax.Array, *,
                block_m=None, block_n=None) -> jax.Array:
    """mask: [M, N], emb: [N, D] -> [M, D] float32 (row-L2-normalized mean)."""
    M, N = mask.shape
    N2, D = emb.shape
    if N != N2:
        raise ValueError("mask/emb inner dims must match")

    mask_isz = jnp.dtype(mask.dtype).itemsize
    emb_isz = jnp.dtype(emb.dtype).itemsize

    # ---- D padding (only copy that ever happens; mask is never copied) -------
    D_pad = _round_up(D, 128)
    use_ones_col = D_pad > D
    if use_ones_col:
        # Spare column D <- 1.0 so row_sum falls out of the MXU matmul.
        pieces = [emb, jnp.ones((N, 1), dtype=emb.dtype)]
        if D_pad - D - 1 > 0:
            pieces.append(jnp.zeros((N, D_pad - D - 1), dtype=emb.dtype))
        emb_in = jnp.concatenate(pieces, axis=1)
        rsum_col = D
    else:
        emb_in = emb                       # already lane-aligned: no copy
        rsum_col = None

    # ---- Generation-gated VMEM budget / tile caps -----------------------------
    try:
        vmem_cap = int(pltpu.get_tpu_info().vmem_capacity_bytes)
    except Exception:                      # conservative fallback
        vmem_cap = 128 << 20
    small_vmem = vmem_cap <= (64 << 20)    # v7x-class part (2 TCs, 64 MiB VMEM)
    vmem_hard_cap = (40 << 20) if small_vmem else (100 << 20)
    tile_budget = (28 << 20) if small_vmem else (60 << 20)
    tm_cap = 256 if small_vmem else 512

    M8 = _round_up(M, 8)
    N128 = _round_up(N, 128)

    def vmem_use(tm_, tk_):
        # double-buffered inputs + (double-buffered) f32 output accumulator
        return (2 * tm_ * tk_ * mask_isz
                + 2 * tk_ * D_pad * emb_isz
                + 2 * tm_ * D_pad * 4)

    # ---- Tile selection: alignment-only, no tile-sized padding ----------------
    if block_m is not None:
        tm = min(_round_up(block_m, 8), M8)
    else:
        tm = min(M8, tm_cap)

    if block_n is not None:
        tk = N if block_n >= N else min(_round_up(block_n, 128), N128)
    else:
        while True:
            if vmem_use(tm, N) <= tile_budget:
                tk = N                     # emb fully resident, fetched once
                break
            avail = tile_budget - 2 * tm * D_pad * 4
            per_tk = 2 * (tm * mask_isz + D_pad * emb_isz)
            tk = 0 if avail <= 0 else (avail // per_tk) // 128 * 128
            if tk >= 128 or tm <= 8 or block_m is not None:
                tk = max(128, min(tk, N128))
                break
            tm = max(8, _round_up(tm // 2, 8))   # shrink tm and retry
        # v7x: keep both TensorCores busy when emb residency makes extra M
        # blocks free (no emb re-streaming penalty).
        if (small_vmem and block_m is None and tk == N and M8 >= 16
                and -(-M // tm) == 1):
            tm = _round_up((M8 + 1) // 2, 8)

    grid = (pl.cdiv(M, tm), pl.cdiv(N, tk))
    ragged_n = (N % tk) != 0

    scratch_shapes = ([] if rsum_col is not None
                      else [pltpu.VMEM((tm, 1), jnp.float32)])

    kernel = functools.partial(
        _avg_readout_kernel,
        n_total=N, block_n=tk, rsum_col=rsum_col, ragged_n=ragged_n)

    # Advisory cost estimate (emb is re-streamed per M tile only when both grid
    # axes are actually tiled).
    gi, gk = grid
    emb_streams = 1 if (gk == 1 or gi == 1) else gi
    bytes_accessed = (M * N * mask_isz
                      + emb_streams * N * D_pad * emb_isz
                      + M * D_pad * 4)
    vmem_limit = int(min(vmem_hard_cap, max(32 << 20, 2 * vmem_use(tm, tk))))

    out_p = pl.pallas_call(
        kernel,
        out_shape=jax.ShapeDtypeStruct((M, D_pad), jnp.float32),
        grid=grid,
        in_specs=[
            pl.BlockSpec((tm, tk), lambda i, k: (i, k)),       # mask tile
            pl.BlockSpec((tk, D_pad), lambda i, k: (k, 0)),    # emb tile (lane-dense)
        ],
        out_specs=pl.BlockSpec((tm, D_pad), lambda i, k: (i, 0)),  # resident acc
        scratch_shapes=scratch_shapes,
        compiler_params=pltpu.CompilerParams(
            dimension_semantics=("parallel", "arbitrary"),
            vmem_limit_bytes=vmem_limit,
        ),
        cost_estimate=pl.CostEstimate(
            flops=2 * M * N * D_pad,
            transcendentals=2 * M,
            bytes_accessed=int(bytes_accessed),
        ),
    )(mask, emb_in)

    return out_p if D_pad == D else out_p[:, :D]


def _reference(mask, emb):
    mask = mask.astype(jnp.float32)
    emb = emb.astype(jnp.float32)
    vsum = mask @ emb
    row_sum = jnp.sum(mask, axis=1, keepdims=True)
    g = vsum / row_sum
    norm = jnp.maximum(jnp.linalg.norm(g, axis=1, keepdims=True), 1e-12)
    return g / norm


if __name__ == "__main__":
    key = jax.random.PRNGKey(0)
    k_mask, k_emb, k_mask2, k_emb2 = jax.random.split(key, 4)

    # --- Test 1: bf16 0/1 pooling mask, unaligned everywhere ------------------
    # M not a multiple of 8, N not a multiple of 128, D < 128.  Small forced
    # tiles exercise the ragged-M / ragged-N in-kernel masking, the multi-step
    # N reduction and the free row_sum from the emb ones-column.
    M, N, D = 12, 300, 32
    mask = jax.random.bernoulli(k_mask, 0.5, (M, N)).astype(jnp.bfloat16)
    mask = mask.at[:, 0].set(1)                      # every row pools something
    emb = jax.random.normal(k_emb, (N, D), dtype=jnp.float32).astype(jnp.bfloat16)

    out = avg_readout(mask, emb, block_m=8, block_n=128)
    out = jax.block_until_ready(out)
    ref = _reference(mask, emb)
    assert out.shape == (M, D)
    assert jnp.allclose(out, ref, atol=1e-4, rtol=1e-4), "bf16 path mismatch vs reference"

    # --- Test 2: f32 weighted mask, lane-aligned D, auto tiling ---------------
    # D % 128 == 0 -> in-kernel row_sum path; emb kept fully resident (tk == N).
    M2, N2, D2 = 10, 200, 128
    mask2 = jax.random.uniform(k_mask2, (M2, N2), jnp.float32, minval=0.1, maxval=1.0)
    emb2 = jax.random.normal(k_emb2, (N2, D2), dtype=jnp.float32)

    out2 = avg_readout(mask2, emb2)
    out2 = jax.block_until_ready(out2)
    ref2 = _reference(mask2, emb2)
    assert out2.shape == (M2, D2)
    assert jnp.allclose(out2, ref2, atol=2e-5, rtol=2e-5), "f32 path mismatch vs reference"

    print("KERNEL_OK")
</pallas_src>

<mosaic_0001>
module attributes {stable_mosaic.version = 11 : i64} {
  func.func @_avg_readout_kernel(%arg0: i32, %arg1: i32, %arg2: memref<8x128xbf16, #tpu.memory_space<vmem>>, %arg3: memref<128x128xbf16, #tpu.memory_space<vmem>>, %arg4: memref<8x128xf32, #tpu.memory_space<vmem>>) attributes {dimension_semantics = [#tpu.dimension_semantics<parallel>, #tpu.dimension_semantics<arbitrary>], iteration_bounds = array<i64: 2, 3>, scalar_prefetch = 0 : i64, scratch_operands = 0 : i64, tpu.core_type = #tpu.core_type<tc>, window_params = [{transform_indices = @transform_0, window_bounds = array<i64: 8, 128>}, {transform_indices = @transform_1, window_bounds = array<i64: 128, 128>}, {transform_indices = @transform_2, window_bounds = array<i64: 8, 128>}]} {
    %c0_i32 = arith.constant 0 : i32
    %0 = arith.cmpi eq, %arg1, %c0_i32 : i32
    %1 = arith.extui %0 : i1 to i32
    %c0_i32_0 = arith.constant 0 : i32
    %2 = arith.cmpi ne, %1, %c0_i32_0 : i32
    scf.if %2 {
      %cst_12 = arith.constant 0.000000e+00 : f32
      %27 = vector.broadcast %cst_12 : f32 to vector<8x128xf32>
      %c0_13 = arith.constant 0 : index
      %c0_14 = arith.constant 0 : index
      %28 = vector.load %arg4[%c0_13, %c0_14] : memref<8x128xf32, #tpu.memory_space<vmem>>, vector<8x128xf32>
      tpu.vector_store %arg4[%c0_13, %c0_14], %27 {strides = array<i32>} : memref<8x128xf32, #tpu.memory_space<vmem>>, vector<8x128xf32>,
    } else {
    }
    %c0 = arith.constant 0 : index
    %c0_1 = arith.constant 0 : index
    %3 = vector.load %arg2[%c0, %c0_1] : memref<8x128xbf16, #tpu.memory_space<vmem>>, vector<8x128xbf16>
    %c0_2 = arith.constant 0 : index
    %c0_3 = arith.constant 0 : index
    %4 = vector.load %arg3[%c0_2, %c0_3] : memref<128x128xbf16, #tpu.memory_space<vmem>>, vector<128x128xbf16>
    %c128_i32 = arith.constant 128 : i32
    %5 = arith.muli %arg1, %c128_i32 : i32
    %6 = tpu.iota {dimensions = array<i32: 1>} : vector<8x128xi32>
    %7 = vector.broadcast %5 : i32 to vector<8x128xi32>
    %8 = arith.addi %7, %6 : vector<8x128xi32>
    %c300_i32 = arith.constant 300 : i32
    %9 = vector.broadcast %c300_i32 : i32 to vector<8x128xi32>
    %10 = arith.cmpi slt, %8, %9 : vector<8x128xi32>
    %cst = arith.constant 0.000000e+00 : bf16
    %11 = vector.broadcast %cst : bf16 to vector<8x128xbf16>
    %12 = arith.select %10, %3, %11 : vector<8x128xi1>, vector<8x128xbf16>
    %13 = tpu.iota {dimensions = array<i32: 0>} : vector<128x128xi32>
    %14 = vector.broadcast %5 : i32 to vector<128x128xi32>
    %15 = arith.addi %14, %13 : vector<128x128xi32>
    %c300_i32_4 = arith.constant 300 : i32
    %16 = vector.broadcast %c300_i32_4 : i32 to vector<128x128xi32>
    %17 = arith.cmpi slt, %15, %16 : vector<128x128xi32>
    %cst_5 = arith.constant 0.000000e+00 : bf16
    %18 = vector.broadcast %cst_5 : bf16 to vector<128x128xbf16>
    %19 = arith.select %17, %4, %18 : vector<128x128xi1>, vector<128x128xbf16>
    %c0_6 = arith.constant 0 : index
    %c0_7 = arith.constant 0 : index
    %20 = vector.load %arg4[%c0_6, %c0_7] : memref<8x128xf32, #tpu.memory_space<vmem>>, vector<8x128xf32>
    %cst_8 = arith.constant dense<0.000000e+00> : vector<8x128xf32>
    %21 = tpu.matmul %12, %19, %cst_8 {dimension_numbers = #tpu.dot_dimension_numbers<[1], [0], [0], [1], [0, 0, 1, 1], [], []>} : vector<8x128xbf16>, vector<128x128xbf16>, vector<8x128xf32> -> vector<8x128xf32>
    %22 = arith.addf %20, %21 : vector<8x128xf32>
    %c0_9 = arith.constant 0 : index
    %c0_10 = arith.constant 0 : index
    %23 = vector.load %arg4[%c0_9, %c0_10] : memref<8x128xf32, #tpu.memory_space<vmem>>, vector<8x128xf32>
    tpu.vector_store %arg4[%c0_9, %c0_10], %22 {strides = array<i32>} : memref<8x128xf32, #tpu.memory_space<vmem>>, vector<8x128xf32>,
    %c2_i32 = arith.constant 2 : i32
    %24 = arith.cmpi eq, %arg1, %c2_i32 : i32
    %25 = arith.extui %24 : i1 to i32
    %c0_i32_11 = arith.constant 0 : i32
    %26 = arith.cmpi ne, %25, %c0_i32_11 : i32
    scf.if %26 {
      %c0_12 = arith.constant 0 : index
      %c0_13 = arith.constant 0 : index
      %27 = vector.load %arg4[%c0_12, %c0_13] : memref<8x128xf32, #tpu.memory_space<vmem>>, vector<8x128xf32>
      %28 = vector.extract_strided_slice %27 {offsets = [0, 32], sizes = [8, 1], strides = [1, 1]} : vector<8x128xf32> to vector<8x1xf32>
      %29 = tpu.iota {dimensions = array<i32: 1>} : vector<8x128xi32>
      %c32_i32 = arith.constant 32 : i32
      %30 = vector.broadcast %c32_i32 : i32 to vector<8x128xi32>
      %31 = arith.cmpi eq, %29, %30 : vector<8x128xi32>
      %cst_14 = arith.constant 0.000000e+00 : f32
      %32 = vector.broadcast %cst_14 : f32 to vector<8x128xf32>
      %33 = arith.select %31, %32, %27 : vector<8x128xi1>, vector<8x128xf32>
      %34 = tpu.reciprocal %28 {approx = true} : vector<8x1xf32> -> vector<8x1xf32>
      %35 = vector.broadcast %34 : vector<8x1xf32> to vector<8x128xf32>
      %36 = arith.mulf %33, %35 : vector<8x128xf32>
      %37 = arith.mulf %36, %36 : vector<8x128xf32>
      %cst_15 = arith.constant dense<0.000000e+00> : vector<8xf32>
      %38 = vector.multi_reduction <add>, %37, %cst_15 [1] : vector<8x128xf32> to vector<8xf32>
      %39 = vector.shape_cast %38 : vector<8xf32> to vector<8x1xf32>
      %cst_16 = arith.constant 1.000000e-24 : f32
      %40 = vector.broadcast %cst_16 : f32 to vector<8x1xf32>
      %41 = arith.maximumf %39, %40 : vector<8x1xf32>
      %42 = math.rsqrt %41 : vector<8x1xf32>
      %43 = vector.broadcast %42 : vector<8x1xf32> to vector<8x128xf32>
      %44 = arith.mulf %36, %43 : vector<8x128xf32>
      %c0_17 = arith.constant 0 : index
      %c0_18 = arith.constant 0 : index
      %45 = vector.load %arg4[%c0_17, %c0_18] : memref<8x128xf32, #tpu.memory_space<vmem>>, vector<8x128xf32>
      tpu.vector_store %arg4[%c0_17, %c0_18], %44 {strides = array<i32>} : memref<8x128xf32, #tpu.memory_space<vmem>>, vector<8x128xf32>,
    } else {
    }
    return
  }
  func.func @transform_0(%arg0: i32, %arg1: i32) -> (i32, i32) {
    %c0_i32 = arith.constant 0 : i32
    return %arg0, %arg1 : i32, i32
  }
  func.func @transform_1(%arg0: i32, %arg1: i32) -> (i32, i32) {
    %c0_i32 = arith.constant 0 : i32
    %c0_i32_0 = arith.constant 0 : i32
    return %arg1, %c0_i32 : i32, i32
  }
  func.func @transform_2(%arg0: i32, %arg1: i32) -> (i32, i32) {
    %c0_i32 = arith.constant 0 : i32
    %c0_i32_0 = arith.constant 0 : i32
    return %arg0, %c0_i32 : i32, i32
  }
}

</mosaic_0001>

<llo_original>
// kernel: tpu_custom_call.1
$region0: #{tpu_custom_call.1}
  #allocation0 [shape = 'u32[]', space=smem, size = 0x4, offset = 0x4, fixed_abs, tag = 'smem constant byte address 0x4 - core index']
  #allocation1 [shape = 'u32[144,128]{1,0:T(1,128)}', space=vmem, size = 0x12000, scoped, tag = 'internal scratch']
  %s0 = inlined_call_operand.hbm [shape: bf16[12,300], index: 0, kind: input, shape index: {}]
  %s1 = inlined_call_operand.hbm [shape: bf16[300,128], index: 1, kind: input, shape index: {}]
  %s2 = inlined_call_operand.hbm [shape: f32[12,128], index: 2, kind: output, shape index: {}]
  %s3 = sld [smem:[#allocation0]]
  $region57: #{tpu_custom_call.1} parent=0
    _
  %s5 = ssub.s32 1, %s3
  %s6 = scalar_select 0, %s5, %s3
  $region1: #{tpu_custom_call.1} parent=0
    #allocation2 [shape = 'u8[4096]{0}', space=vmem, size = 0x1000, scoped, tag = 'input window, operand 0']
    #allocation3 [shape = 's32[2]{0}', space=sflag, size = 0x8, scoped, tag = 'scoped memory for tpu_custom_call.1']
    #allocation4 [shape = 's32[2]{0}', space=sflag, size = 0x8, scoped, tag = 'scoped memory for tpu_custom_call.1']
    #allocation5 [shape = 'u8[65536]{0}', space=vmem, size = 0x10000, scoped, tag = 'input window, operand 1']
    #allocation6 [shape = 's32[2]{0}', space=sflag, size = 0x8, scoped, tag = 'scoped memory for tpu_custom_call.1']
    #allocation7 [shape = 'u8[8192]{0}', space=vmem, size = 0x2000, scoped, tag = 'output window, operand 0']
    %7 = vsyncpa [#allocation3], 0
    %s8 = scalar_lea.sflag [#allocation3], 1
    %9 = vsyncpa %s8, 0
    %10 = vsyncpa [#allocation6], 0
    %s11 = scalar_lea.sflag [#allocation6], 1
    %12 = vsyncpa %s11, 0
    %13 = vsyncpa [#allocation4], 0
    %s14 = scalar_lea.sflag [#allocation4], 1
    %15 = vsyncpa %s14, 0
    loop: start=0, step=1, limit=8
    $region2: #{tpu_custom_call.1} parent=1 // loop_pre_header
      _
    $region3: #{tpu_custom_call.1} parent=1 // loop_header
      %s17 = sphi 0, %s21
      %p18 = scmp.ge.s32.totalorder %s17, 8
      %s24 = sphi 0, %s36
      %s25 = sphi 0, %s32
      %s26 = sphi 0, %s24
      %s27 = sphi 0, %s25
      %s28 = sphi 0, %s26
      %s29 = sphi 0, %s27
      %s41 = sphi 0, %s43
      %s44 = sphi 0, %s41
      %s45 = sphi 0, %s44
      %s61 = sphi 0, %s45
      %s67 = sphi 0, %s69
      %s70 = sphi 0, %s67
      %s71 = sphi 0, %s70
      %s87 = sphi 0, %s71
      %s93 = sphi 0, %s95
      %s96 = sphi 0, %s93
      %s97 = sphi 0, %s96
      %s113 = sphi 0, %s97
    $region4: #{tpu_custom_call.1} parent=1 // loop_header_branch
      %20 = sbr.rel (%p18) target = $region8
    $region5: #{tpu_custom_call.1} parent=1 // loop_body
      %s22 = ssub.s32 %s17, 1
      %s23 = ssub.s32 %s17, 2
      %s30 = sadd.s32 1, %s25
      %p31 = scmp.ge.s32.totalorder %s30, 3
      %s32 = scalar_select %p31, 0, %s30
      %s33 = sadd.s32 1, %s24
      %s34 = scalar_select %p31, %s33, %s24
      %p35 = scmp.ge.s32.totalorder %s34, 2
      %s36 = scalar_select %p35, 0, %s34
      %s37 = ssub.s32 %s24, %s36
      %s38 = ssub.s32 %s25, %s32
      %s39 = sor.u32 %s37, %s38
      %p40 = scmp.eq.s32.totalorder %s39, 0
      %s42 = sadd.s32 %s41, 1
      %s43 = scalar_select %p40, %s41, %s42
      %p46 = pneg %p40
      %p47 = scmp.eq.s32.totalorder %s17, 5
      %p48 = por %p46, %p47
      %p49 = scmp.ne.s32.totalorder %s41, %s44
      %p50 = scmp.eq.s32.totalorder %s17, 0
      %p51 = por %p49, %p50
      %p52 = scmp.ne.s32.totalorder %s41, %s44
      %p53 = scmp.eq.s32.totalorder %s22, 5
      %p54 = por %p52, %p53
      %p55 = scmp.ne.s32.totalorder %s44, %s45
      %p56 = scmp.eq.s32.totalorder %s22, 0
      %p57 = por %p55, %p56
      %p58 = scmp.ne.s32.totalorder %s44, %s45
      %p59 = scmp.eq.s32.totalorder %s23, 5
      %p60 = por %p58, %p59
      %p62 = scmp.ne.s32.totalorder %s45, %s61
      %p63 = scmp.eq.s32.totalorder %s23, 0
      %p64 = por %p62, %p63
      %s65 = ssub.s32 %s25, %s32
      %p66 = scmp.eq.s32.totalorder %s65, 0
      %s68 = sadd.s32 %s67, 1
      %s69 = scalar_select %p66, %s67, %s68
      %p72 = pneg %p66
      %p73 = scmp.eq.s32.totalorder %s17, 5
      %p74 = por %p72, %p73
      %p75 = scmp.ne.s32.totalorder %s67, %s70
      %p76 = scmp.eq.s32.totalorder %s17, 0
      %p77 = por %p75, %p76
      %p78 = scmp.ne.s32.totalorder %s67, %s70
      %p79 = scmp.eq.s32.totalorder %s22, 5
      %p80 = por %p78, %p79
      %p81 = scmp.ne.s32.totalorder %s70, %s71
      %p82 = scmp.eq.s32.totalorder %s22, 0
      %p83 = por %p81, %p82
      %p84 = scmp.ne.s32.totalorder %s70, %s71
      %p85 = scmp.eq.s32.totalorder %s23, 5
      %p86 = por %p84, %p85
      %p88 = scmp.ne.s32.totalorder %s71, %s87
      %p89 = scmp.eq.s32.totalorder %s23, 0
      %p90 = por %p88, %p89
      %s91 = ssub.s32 %s24, %s36
      %p92 = scmp.eq.s32.totalorder %s91, 0
      %s94 = sadd.s32 %s93, 1
      %s95 = scalar_select %p92, %s93, %s94
      %p98 = pneg %p92
      %p99 = scmp.eq.s32.totalorder %s17, 5
      %p100 = por %p98, %p99
      %p101 = scmp.ne.s32.totalorder %s93, %s96
      %p102 = scmp.eq.s32.totalorder %s17, 0
      %p103 = por %p101, %p102
      %p104 = scmp.ne.s32.totalorder %s93, %s96
      %p105 = scmp.eq.s32.totalorder %s22, 5
      %p106 = por %p104, %p105
      %p107 = scmp.ne.s32.totalorder %s96, %s97
      %p108 = scmp.eq.s32.totalorder %s22, 0
      %p109 = por %p107, %p108
      %p110 = scmp.ne.s32.totalorder %s96, %s97
      %p111 = scmp.eq.s32.totalorder %s23, 5
      %p112 = por %p110, %p111
      %p114 = scmp.ne.s32.totalorder %s97, %s113
      %p115 = scmp.eq.s32.totalorder %s23, 0
      %p116 = por %p114, %p115
      %p117 = scmp.le.s32.totalorder 1, %s17
      %p118 = scmp.lt.s32.totalorder %s17, 7
      %p119 = pnand %p117, %p118
      %p120 = pneg %p119
      // Predicated region
      $region9: #{tpu_custom_call.1} parent=5 // pred_check
        _
      $region10: #{tpu_custom_call.1} parent=5 // pred_check_branch
        %122 = sbr.rel (%p119) target = $region12
      $region11: #{tpu_custom_call.1} parent=5 // pred_region
        %s123 = ssub.s32 %s17, 1
      $region12: #{tpu_custom_call.1} parent=5 // pred_fallthru
        _
      %p124 = scmp.lt.s32.totalorder %s17, 6
      // Predicated region
      $region13: #{tpu_custom_call.1} parent=5 // pred_check
        %p125 = pneg %p124
      $region14: #{tpu_custom_call.1} parent=5 // pred_check_branch
        %127 = sbr.rel (%p125) target = $region16
      $region15: #{tpu_custom_call.1} parent=5 // pred_region
        // Predicated region
        $region17: #{tpu_custom_call.1} parent=15 // pred_check
          %p128 = pneg %p51
        $region18: #{tpu_custom_call.1} parent=15 // pred_check_branch
          %130 = sbr.rel (%p128) target = $region20
        $region19: #{tpu_custom_call.1} parent=15 // pred_region
          %s131 = sand.u32 %s41, 1
          %s132 = scalar_lea.sflag [#allocation3], %s131
          %s133 = sand.u32 %s41, 1
          %s134 = smul.addr %s133, 4
          %s135 = scalar_lea.vmem [#allocation2], %s134
          %s137 = ssub.s32 64, 64
          %138 = vsyncadd %s132, %s137
          %s139 = smul.addr %s24, 3
          %s140 = sadd.s32 %s25, %s139
          %s141 = smul.addr %s140, 64
          %s142 = scalar_lea.hbm %s0, %s141
          %s144 = sshll.u32 %s135, 4
          %s145 = int_to_ptr.vmem [resolvable:$true] %s144
          %147 = dma.hbm_to_vmem [thread:$0]  %s142, 64, %s145, %s132
        $region20: #{tpu_custom_call.1} parent=15 // pred_fallthru
          _
        // Predicated region
        $region21: #{tpu_custom_call.1} parent=15 // pred_check
          %p148 = pneg %p77
        $region22: #{tpu_custom_call.1} parent=15 // pred_check_branch
          %150 = sbr.rel (%p148) target = $region24
        $region23: #{tpu_custom_call.1} parent=15 // pred_region
          %s151 = sand.u32 %s67, 1
          %s152 = scalar_lea.sflag [#allocation6], %s151
          %s153 = sand.u32 %s67, 1
          %s154 = smul.addr %s153, 64
          %s155 = scalar_lea.vmem [#allocation5], %s154
          %s156 = smul.u32 16, %s25
          %s157 = ssub.s32 38, %s156
          %p158 = scmp.lt.s32.totalorder %s157, 16
          %s159 = scalar_select %p158, %s157, 16
          %s160 = smul.u32 64, %s159
          %s162 = ssub.s32 1024, %s160
          %163 = vsyncadd %s152, %s162
          %p164 = scmp.ne.s32.totalorder 0, %s160
          %s165 = smul.addr %s156, 64
          %s166 = scalar_lea.hbm %s1, %s165
          %s167 = smul.u32 4, %s159
          %s168 = sshll.u32 %s155, 4
          %s169 = int_to_ptr.vmem [resolvable:$true] %s168
          %s170 = sshll.u32 %s167, 4
          %174 = dma.hbm_to_vmem [thread:$0]  (%p164), %s166, %s170, %s169, %s152, 64, 64, 4
        $region24: #{tpu_custom_call.1} parent=15 // pred_fallthru
          _
      $region16: #{tpu_custom_call.1} parent=5 // pred_fallthru
        _
      %p175 = scmp.le.s32.totalorder 1, %s17
      %p176 = scmp.lt.s32.totalorder %s17, 7
      %p177 = pnand %p175, %p176
      %p178 = pneg %p177
      // Predicated region
      $region25: #{tpu_custom_call.1} parent=5 // pred_check
        _
      $region26: #{tpu_custom_call.1} parent=5 // pred_check_branch
        %180 = sbr.rel (%p177) target = $region28
      $region27: #{tpu_custom_call.1} parent=5 // pred_region
        %s181 = ssub.s32 %s17, 1
        %s182 = sand.u32 %s44, 1
        %s183 = scalar_lea.sflag [#allocation3], %s182
        %s184 = sand.u32 %s44, 1
        %s185 = smul.addr %s184, 4
        %s186 = scalar_lea.vmem [#allocation2], %s185
        // Predicated region
        $region29: #{tpu_custom_call.1} parent=27 // pred_check
          %p187 = pneg %p57
        $region30: #{tpu_custom_call.1} parent=27 // pred_check_branch
          %189 = sbr.rel (%p187) target = $region32
        $region31: #{tpu_custom_call.1} parent=27 // pred_region
          %190 = dma.done %s183, 64
        $region32: #{tpu_custom_call.1} parent=27 // pred_fallthru
          _
        %s191 = sand.u32 %s70, 1
        %s192 = scalar_lea.sflag [#allocation6], %s191
        %s193 = sand.u32 %s70, 1
        %s194 = smul.addr %s193, 64
        %s195 = scalar_lea.vmem [#allocation5], %s194
        // Predicated region
        $region33: #{tpu_custom_call.1} parent=27 // pred_check
          %p196 = pneg %p83
        $region34: #{tpu_custom_call.1} parent=27 // pred_check_branch
          %198 = sbr.rel (%p196) target = $region36
        $region35: #{tpu_custom_call.1} parent=27 // pred_region
          %199 = dma.done %s192, 1024
        $region36: #{tpu_custom_call.1} parent=27 // pred_fallthru
          _
        %s200 = sand.u32 %s44, 1
        %s201 = scalar_lea.sflag [#allocation3], %s200
        %s202 = sand.u32 %s44, 1
        %s203 = smul.addr %s202, 4
        %s204 = scalar_lea.vmem [#allocation2], %s203
        %p205 = pneg %p57
        %p206 = pneg %p54
        %s207 = sand.u32 %s70, 1
        %s208 = scalar_lea.sflag [#allocation6], %s207
        %s209 = sand.u32 %s70, 1
        %s210 = smul.addr %s209, 64
        %s211 = scalar_lea.vmem [#allocation5], %s210
        %p212 = pneg %p83
        %p213 = pneg %p80
        %p214 = pneg %p109
        %p215 = pneg %p106
        %s216 = sand.u32 %s96, 1
        %s217 = scalar_lea.sflag [#allocation4], %s216
        %s218 = sand.u32 %s96, 1
        %s219 = smul.addr %s218, 8
        %s220 = scalar_lea.vmem [#allocation7], %s219
        %s221 = smul.u32 16, %s27
        %s222 = ssub.s32 38, %s221
        %p223 = scmp.lt.s32.totalorder %s222, 16
        %s224 = scalar_select %p223, %s222, 16
        %s225 = smul.u32 64, %s224
        %p227 = scmp.eq.s32.totalorder %s27, 0
        // Predicated region
        $region37: #{tpu_custom_call.1} parent=27 // pred_check
          %p228 = pneg %p227
        $region38: #{tpu_custom_call.1} parent=27 // pred_check_branch
          %230 = sbr.rel (%p228) target = $region40
        $region39: #{tpu_custom_call.1} parent=27 // pred_region
          %231 = vst [vmem:[%s220] sm:$0xff] 0.0
        $region40: #{tpu_custom_call.1} parent=27 // pred_fallthru
          _
        %v232 = vld [vmem:[%s186] sm:$0xf]
        %v233 = vld [vmem:[%s195] sm:$0xf]
        %v234 = vld [vmem:[%s195 + $0x4] sm:$0xf]
        %v235 = vld [vmem:[%s195 + $0x8] sm:$0xf]
        %v236 = vld [vmem:[%s195 + $0xc] sm:$0xf]
        %v237 = vld [vmem:[%s195 + $0x10] sm:$0xf]
        %v238 = vld [vmem:[%s195 + $0x14] sm:$0xf]
        %v239 = vld [vmem:[%s195 + $0x18] sm:$0xf]
        %v240 = vld [vmem:[%s195 + $0x1c] sm:$0xf]
        %v241 = vld [vmem:[%s195 + $0x20] sm:$0xf]
        %v242 = vld [vmem:[%s195 + $0x24] sm:$0xf]
        %v243 = vld [vmem:[%s195 + $0x28] sm:$0xf]
        %v244 = vld [vmem:[%s195 + $0x2c] sm:$0xf]
        %v245 = vld [vmem:[%s195 + $0x30] sm:$0xf]
        %v246 = vld [vmem:[%s195 + $0x34] sm:$0xf]
        %v247 = vld [vmem:[%s195 + $0x38] sm:$0xf]
        %v248 = vld [vmem:[%s195 + $0x3c] sm:$0xf]
        %s249 = smul.u32 %s27, 128
        %v250 = vlaneseq
        %v251 = vand.u32 %v250, 127
        %v252 = vstv %s249
        %v253 = vadd.s32 %v252, %v251
        %vm254 = vcmp.lt.s32.totalorder %v253, 300
        %vm255 = vmpackc.low %vm254, %vm254
        %v256 = vsel %vm255, %v232, 0
        %v257 = vlaneseq
        %v258 = vshrl.u32 %v257, 7
        %v259 = vadd.s32 %v258, 8
        %v260 = vadd.s32 %v258, 16
        %v261 = vadd.s32 %v258, 24
        %v262 = vadd.s32 %v258, 32
        %v263 = vadd.s32 %v258, 40
        %v264 = vadd.s32 %v258, 48
        %v265 = vadd.s32 %v258, 56
        %v266 = vadd.s32 %v258, 64
        %v267 = vadd.s32 %v258, 72
        %v268 = vadd.s32 %v258, 80
        %v269 = vadd.s32 %v258, 88
        %v270 = vadd.s32 %v258, 96
        %v271 = vadd.s32 %v258, 104
        %v272 = vadd.s32 %v258, 112
        %v273 = vadd.s32 %v258, 120
        %v274 = vadd.s32 %v252, %v258
        %v275 = vadd.s32 %v252, %v259
        %v276 = vadd.s32 %v252, %v260
        %v277 = vadd.s32 %v252, %v261
        %v278 = vadd.s32 %v252, %v262
        %v279 = vadd.s32 %v252, %v263
        %v280 = vadd.s32 %v252, %v264
        %v281 = vadd.s32 %v252, %v265
        %v282 = vadd.s32 %v252, %v266
        %v283 = vadd.s32 %v252, %v267
        %v284 = vadd.s32 %v252, %v268
        %v285 = vadd.s32 %v252, %v269
        %v286 = vadd.s32 %v252, %v270
        %v287 = vadd.s32 %v252, %v271
        %v288 = vadd.s32 %v252, %v272
        %v289 = vadd.s32 %v252, %v273
        %vm290 = vcmp.lt.s32.totalorder %v274, 300
        %vm291 = vcmp.lt.s32.totalorder %v275, 300
        %vm292 = vcmp.lt.s32.totalorder %v276, 300
        %vm293 = vcmp.lt.s32.totalorder %v277, 300
        %vm294 = vcmp.lt.s32.totalorder %v278, 300
        %vm295 = vcmp.lt.s32.totalorder %v279, 300
        %vm296 = vcmp.lt.s32.totalorder %v280, 300
        %vm297 = vcmp.lt.s32.totalorder %v281, 300
        %vm298 = vcmp.lt.s32.totalorder %v282, 300
        %vm299 = vcmp.lt.s32.totalorder %v283, 300
        %vm300 = vcmp.lt.s32.totalorder %v284, 300
        %vm301 = vcmp.lt.s32.totalorder %v285, 300
        %vm302 = vcmp.lt.s32.totalorder %v286, 300
        %vm303 = vcmp.lt.s32.totalorder %v287, 300
        %vm304 = vcmp.lt.s32.totalorder %v288, 300
        %vm305 = vcmp.lt.s32.totalorder %v289, 300
        %vm306 = vmpackc.low %vm290, %vm290
        %vm307 = vmpackc.low %vm291, %vm291
        %vm308 = vmpackc.low %vm292, %vm292
        %vm309 = vmpackc.low %vm293, %vm293
        %vm310 = vmpackc.low %vm294, %vm294
        %vm311 = vmpackc.low %vm295, %vm295
        %vm312 = vmpackc.low %vm296, %vm296
        %vm313 = vmpackc.low %vm297, %vm297
        %vm314 = vmpackc.low %vm298, %vm298
        %vm315 = vmpackc.low %vm299, %vm299
        %vm316 = vmpackc.low %vm300, %vm300
        %vm317 = vmpackc.low %vm301, %vm301
        %vm318 = vmpackc.low %vm302, %vm302
        %vm319 = vmpackc.low %vm303, %vm303
        %vm320 = vmpackc.low %vm304, %vm304
        %vm321 = vmpackc.low %vm305, %vm305
        %v322 = vsel %vm306, %v233, 0
        %v323 = vsel %vm307, %v234, 0
        %v324 = vsel %vm308, %v235, 0
        %v325 = vsel %vm309, %v236, 0
        %v326 = vsel %vm310, %v237, 0
        %v327 = vsel %vm311, %v238, 0
        %v328 = vsel %vm312, %v239, 0
        %v329 = vsel %vm313, %v240, 0
        %v330 = vsel %vm314, %v241, 0
        %v331 = vsel %vm315, %v242, 0
        %v332 = vsel %vm316, %v243, 0
        %v333 = vsel %vm317, %v244, 0
        %v334 = vsel %vm318, %v245, 0
        %v335 = vsel %vm319, %v246, 0
        %v336 = vsel %vm320, %v247, 0
        %v337 = vsel %vm321, %v248, 0
        %v338 = vld [vmem:[%s220] sm:$0xff]
        %v355 = vunpack.c.l.b16 %v322
        %v356 = vunpack.c.l.b16 %v323
        %v357 = vunpack.c.l.b16 %v324
        %v358 = vunpack.c.l.b16 %v325
        %v359 = vunpack.c.l.b16 %v326
        %v360 = vunpack.c.l.b16 %v327
        %v361 = vunpack.c.l.b16 %v328
        %v362 = vunpack.c.l.b16 %v329
        %v363 = vunpack.c.l.b16 %v330
        %v364 = vunpack.c.l.b16 %v331
        %v365 = vunpack.c.l.b16 %v332
        %v366 = vunpack.c.l.b16 %v333
        %v367 = vunpack.c.l.b16 %v334
        %v368 = vunpack.c.l.b16 %v335
        %v369 = vunpack.c.l.b16 %v336
        %v370 = vunpack.c.l.b16 %v337
        %v371 = vpack.c.b16 %v356, %v355
        %v372 = vpack.c.b16 %v358, %v357
        %v373 = vpack.c.b16 %v360, %v359
        %v374 = vpack.c.b16 %v362, %v361
        %v375 = vpack.c.b16 %v364, %v363
        %v376 = vpack.c.b16 %v366, %v365
        %v377 = vpack.c.b16 %v368, %v367
        %v378 = vpack.c.b16 %v370, %v369
        %387 = vmatprep.subr.bf16.mxu0 0
        %388 = vmatpush1.bf16.msra.mxu0 %v371
        %389 = vmatprep.subr.bf16.mxu0 0
        %390 = vmatpush1.bf16.msra.mxu0 %v372
        %391 = vmatprep.subr.bf16.mxu0 0
        %392 = vmatpush1.bf16.msra.mxu0 %v373
        %393 = vmatprep.subr.bf16.mxu0 0
        %394 = vmatpush1.bf16.msra.mxu0 %v374
        %395 = vmatprep.subr.bf16.mxu0 0
        %396 = vmatpush1.bf16.msra.mxu0 %v375
        %397 = vmatprep.subr.bf16.mxu0 0
        %398 = vmatpush1.bf16.msra.mxu0 %v376
        %399 = vmatprep.subr.bf16.mxu0 0
        %400 = vmatpush1.bf16.msra.mxu0 %v377
        %401 = vmatprep.subr.bf16.mxu0 0
        %402 = vmatpush1.bf16.msra.mxu0 %v378
        %403 = vmatprep.subr.bf16.mxu0 0
        %404 = vmatpush1.bf16.msra.mxu0 0
        %405 = vmatprep.subr.bf16.mxu0 0
        %406 = vmatpush1.bf16.msra.mxu0 0
        %407 = vmatprep.subr.bf16.mxu0 0
        %408 = vmatpush1.bf16.msra.mxu0 0
        %409 = vmatprep.subr.bf16.mxu0 0
        %410 = vmatpush1.bf16.msra.mxu0 0
        %411 = vmatprep.subr.bf16.mxu0 0
        %412 = vmatpush1.bf16.msra.mxu0 0
        %413 = vmatprep.subr.bf16.mxu0 0
        %414 = vmatpush1.bf16.msra.mxu0 0
        %415 = vmatprep.subr.bf16.mxu0 0
        %416 = vmatpush1.bf16.msra.mxu0 0
        %417 = vmatprep.subr.bf16.mxu0 0
        %418 = vmatpush1.bf16.msra.mxu0 0
        %419 = vmatprep.mubr.bf16.mxu0 0
        %420 = vmatmul.mubr.bf16.gmra.mrb[0].mxu0 %v256
        %v421 = vpop.f32.mrb[0].mxu0
        %v422 = vadd.f32 0.0, %v421
        %v423 = vpop.f32.mrb[0].mxu0
        %v424 = vpop.f32.mrb[0].mxu0
        %v425 = vpop.f32.mrb[0].mxu0
        %426 = vdwg.mxu0
        %v427 = vadd.f32 %v338, %v422
        %428 = vst [vmem:[%s220] sm:$0xff] %v427
        %p429 = scmp.eq.s32.totalorder %s27, 2
        // Predicated region
        $region41: #{tpu_custom_call.1} parent=27 // pred_check
          %p430 = pneg %p429
        $region42: #{tpu_custom_call.1} parent=27 // pred_check_branch
          %432 = sbr.rel (%p430) target = $region44
        $region43: #{tpu_custom_call.1} parent=27 // pred_region
          %v433 = vld [vmem:[%s220] sm:$0xff]
          %vm434 = vcmp.eq.s32.totalorder %v251, 32
          %v435 = vsel %vm434, 0.0, %v433
          %v436 = vrcp.pop %v433
          %438 = vset.pattern.permute.xlu0 32
          %439 = vperm.xlu0 %438, %v436
          %v440 = vpop.permute.xlu0 %439
          %v442 = vmul.f32 %v435, %v440
          %v443 = vmul.f32 %v442, %v442
          %444 = vadd.xlane.f32.xlu0 %v443
          %v445 = vpop.xlane.xlu0 %444
          %v446 = vmax.f32 %v445, 1e-24
          %v447 = vrsqrt.pop %v446
          %v448 = vmul.f32 %v442, %v447
          %449 = vst [vmem:[%s220] sm:$0xff] %v448
        $region44: #{tpu_custom_call.1} parent=27 // pred_fallthru
          _
        %s450 = sand.u32 %s96, 1
        %s451 = scalar_lea.sflag [#allocation4], %s450
        %s452 = sand.u32 %s96, 1
        %s453 = smul.addr %s452, 8
        %s454 = scalar_lea.vmem [#allocation7], %s453
        // Predicated region
        $region45: #{tpu_custom_call.1} parent=27 // pred_check
          %p455 = pneg %p106
        $region46: #{tpu_custom_call.1} parent=27 // pred_check_branch
          %457 = sbr.rel (%p455) target = $region48
        $region47: #{tpu_custom_call.1} parent=27 // pred_region
          %s459 = ssub.s32 128, 128
          %460 = vsyncadd %s451, %s459
          %s461 = smul.addr %s26, 128
          %s462 = scalar_lea.hbm %s2, %s461
          %s464 = sshll.u32 %s454, 4
          %s465 = int_to_ptr.vmem [resolvable:$true] %s464
          %467 = dma.vmem_to_hbm [thread:$0]  %s465, 128, %s462, %s451
        $region48: #{tpu_custom_call.1} parent=27 // pred_fallthru
          _
      $region28: #{tpu_custom_call.1} parent=5 // pred_fallthru
        _
      %p468 = scmp.le.s32.totalorder 2, %s17
      // Predicated region
      $region49: #{tpu_custom_call.1} parent=5 // pred_check
        %p469 = pneg %p468
      $region50: #{tpu_custom_call.1} parent=5 // pred_check_branch
        %471 = sbr.rel (%p469) target = $region52
      $region51: #{tpu_custom_call.1} parent=5 // pred_region
        %s472 = ssub.s32 %s17, 2
        // Predicated region
        $region53: #{tpu_custom_call.1} parent=51 // pred_check
          %p473 = pneg %p112
        $region54: #{tpu_custom_call.1} parent=51 // pred_check_branch
          %475 = sbr.rel (%p473) target = $region56
        $region55: #{tpu_custom_call.1} parent=51 // pred_region
          %s476 = sand.u32 %s97, 1
          %s477 = scalar_lea.sflag [#allocation4], %s476
          %s478 = sand.u32 %s97, 1
          %s479 = smul.addr %s478, 8
          %s480 = scalar_lea.vmem [#allocation7], %s479
          %481 = dma.done %s477, 128
        $region56: #{tpu_custom_call.1} parent=51 // pred_fallthru
          _
      $region52: #{tpu_custom_call.1} parent=5 // pred_fallthru
        _
    $region6: #{tpu_custom_call.1} parent=1 // loop_footer
      %s21 = sadd.s32 1, %s17
    $region7: #{tpu_custom_call.1} parent=1 // loop_footer_branch
      %16 = sbr.rel target = $region3
    $region8: #{tpu_custom_call.1} parent=1 // loop_exit
      _
    %482 = vsyncpa [#allocation3], 1
    %s483 = scalar_lea.sflag [#allocation3], 1
    %484 = vsyncpa %s483, 1
    %485 = vsyncpa [#allocation6], 1
    %s486 = scalar_lea.sflag [#allocation6], 1
    %487 = vsyncpa %s486, 1
    %488 = vsyncpa [#allocation4], 1
    %s489 = scalar_lea.sflag [#allocation4], 1
    %490 = vsyncpa %s489, 1

</llo_original>
